<compile_context>
chip_gen: v6e
topology: v6e:2x2x1
jax: 0.10.0
libtpu: 0.0.40
codegen_flags: <defaults>
</compile_context>

<pallas_src>
import math

import jax
import jax.numpy as jnp
from jax.experimental import pallas as pl
from jax.experimental.pallas import tpu as pltpu

# Module hyper-parameters (defaults of AdaptiveWingLoss).
OMEGA = 14.0
THETA = 0.5
EPSILON = 1.0
ALPHA = 2.1

_T = THETA / EPSILON                 # theta / epsilon
_LOG_T = math.log(_T)                # ln(theta / epsilon)
_INV_OMEGA = 1.0 / OMEGA
_INV_EPS = 1.0 / EPSILON
_TINY = 1e-37                        # clamp for log(0) -> exp(e*log(tiny)) ~ 0

_LANES = 128
_MAX_BLOCK_ROWS = 1024               # 1024x128 f32 = 512 KiB per input tile


def _make_kernel(block_rows, total_rows, mask_tail):
    """Kernel factory: closes over static tiling parameters."""

    def kernel(pred_ref, targ_ref, out_ref):
        i = pl.program_id(0)

        @pl.when(i == 0)
        def _():
            out_ref[...] = jnp.zeros_like(out_ref)

        # Cast AFTER the load so HBM traffic stays in the native dtype.
        y = targ_ref[...].astype(jnp.float32)
        y_hat = pred_ref[...].astype(jnp.float32)

        delta = jnp.abs(y - y_hat)
        e = ALPHA - y                                  # target-dependent exponent

        # ---- branch 1: delta < theta -------------------------------------
        # (delta / omega)^e via exp(e * log(.)); base clamped so delta == 0
        # gives ~0 (matching torch.pow(0, e>0) == 0).
        base1 = delta * _INV_OMEGA
        pow1 = jnp.exp(e * jnp.log(jnp.maximum(base1, _TINY)))
        loss1 = OMEGA * jnp.log(1.0 + pow1)

        # ---- branch 2: delta >= theta ------------------------------------
        pow_t = jnp.exp(e * _LOG_T)                    # (theta/eps)^e
        pow_tm1 = pow_t * (EPSILON / THETA)            # (theta/eps)^(e-1)
        log1p_t = jnp.log(1.0 + pow_t)
        A = (OMEGA * _INV_EPS) * e * pow_tm1 / (1.0 + pow_t)
        C = THETA * A - OMEGA * log1p_t
        loss2 = A * delta - C

        loss = jnp.where(delta < THETA, loss1, loss2)

        if mask_tail:
            # Zero out rows read past the end of the input (ragged last block).
            row = (
                jax.lax.broadcasted_iota(jnp.int32, loss.shape, 0)
                + i * block_rows
            )
            loss = jnp.where(row < total_rows, loss, 0.0)

        # Sublane-only reduce per step; 128 lane-wise partial sums stay
        # resident in the VMEM output block across the whole grid.
        out_ref[...] += jnp.sum(loss, axis=0, keepdims=True)

    return kernel


def adaptive_wing_loss(pred, target):
    """Pallas-backed AdaptiveWingLoss: mean adaptive wing loss over all elems."""
    assert pred.shape == target.shape
    n = pred.size

    flat_p = pred.reshape(-1)
    flat_t = target.reshape(-1)

    # Pad only to the next multiple of 128 (if needed). Zero padding in BOTH
    # arrays gives delta == 0, y == 0, e == alpha > 0 -> loss == 0, so the sum
    # (and the mean over the true n) is unaffected.
    rem = n % _LANES
    if rem:
        pad = _LANES - rem
        flat_p = jnp.pad(flat_p, (0, pad))
        flat_t = jnp.pad(flat_t, (0, pad))

    rows = flat_p.shape[0] // _LANES
    p2 = flat_p.reshape(rows, _LANES)
    t2 = flat_t.reshape(rows, _LANES)

    # Full-extent block for small inputs (always legal); otherwise 1024 rows
    # (multiple of 32 -> valid for f32/bf16/int8 sublane packing).
    block_rows = rows if rows <= _MAX_BLOCK_ROWS else _MAX_BLOCK_ROWS
    num_blocks = pl.cdiv(rows, block_rows)
    mask_tail = (rows % block_rows) != 0

    kernel = _make_kernel(block_rows, rows, mask_tail)

    itemsize = jnp.dtype(pred.dtype).itemsize
    cost = pl.CostEstimate(
        flops=20 * n,
        transcendentals=6 * n,
        bytes_accessed=2 * n * itemsize + 4 * _LANES,
    )

    partial = pl.pallas_call(
        kernel,
        out_shape=jax.ShapeDtypeStruct((1, _LANES), jnp.float32),
        grid=(num_blocks,),
        in_specs=[
            pl.BlockSpec((block_rows, _LANES), lambda i: (i, 0)),
            pl.BlockSpec((block_rows, _LANES), lambda i: (i, 0)),
        ],
        out_specs=pl.BlockSpec((1, _LANES), lambda i: (0, 0)),
        compiler_params=pltpu.CompilerParams(
            dimension_semantics=("arbitrary",),
        ),
        cost_estimate=cost,
    )(p2, t2)

    return jnp.sum(partial) / jnp.float32(n)


def _adaptive_wing_ref(pred, target):
    """Pure-JAX reference matching the PyTorch AdaptiveWingLoss semantics."""
    y = target.astype(jnp.float32)
    y_hat = pred.astype(jnp.float32)
    delta = jnp.abs(y - y_hat)
    e = ALPHA - y
    loss1 = OMEGA * jnp.log(1.0 + (delta / OMEGA) ** e)
    t = THETA / EPSILON
    A = OMEGA * (1.0 / (1.0 + t ** e)) * e * t ** (e - 1.0) * (1.0 / EPSILON)
    C = THETA * A - OMEGA * jnp.log(1.0 + t ** e)
    loss2 = A * delta - C
    loss = jnp.where(delta < THETA, loss1, loss2)
    return jnp.sum(loss) / loss.size


if __name__ == "__main__":
    key = jax.random.PRNGKey(0)
    k_pred, k_targ = jax.random.split(key)

    # B x N x H x H heatmaps, values in [0, 1] as the module expects.
    shape = (2, 4, 16, 16)
    target = jax.random.uniform(k_targ, shape, dtype=jnp.float32)
    noise = 0.3 * jax.random.normal(k_pred, shape, dtype=jnp.float32)
    pred = jnp.clip(target + noise, 0.0, 1.0)   # both |delta|<theta and >=theta occur

    out = adaptive_wing_loss(pred, target)
    out = jax.block_until_ready(out)

    ref = _adaptive_wing_ref(pred, target)
    assert jnp.allclose(out, ref, rtol=1e-4, atol=1e-5), (out, ref)

    print("KERNEL_OK")
</pallas_src>

<mosaic_0001>
module attributes {stable_mosaic.version = 11 : i64} {
  func.func @kernel(%arg0: i32, %arg1: memref<16x128xf32, #tpu.memory_space<vmem>>, %arg2: memref<16x128xf32, #tpu.memory_space<vmem>>, %arg3: memref<1x128xf32, #tpu.memory_space<vmem>>) attributes {dimension_semantics = [#tpu.dimension_semantics<arbitrary>], iteration_bounds = array<i64: 1>, scalar_prefetch = 0 : i64, scratch_operands = 0 : i64, tpu.core_type = #tpu.core_type<tc>, window_params = [{transform_indices = @transform_0, window_bounds = array<i64: 16, 128>}, {transform_indices = @transform_1, window_bounds = array<i64: 16, 128>}, {pipeline_mode = #tpu.pipeline_mode<synchronous>, transform_indices = @transform_2, window_bounds = array<i64: 1, 128>}]} {
    %c0_i32 = arith.constant 0 : i32
    %0 = arith.cmpi eq, %arg0, %c0_i32 : i32
    %1 = arith.extui %0 : i1 to i32
    %c0_i32_0 = arith.constant 0 : i32
    %2 = arith.cmpi ne, %1, %c0_i32_0 : i32
    scf.if %2 {
      %cst_21 = arith.constant 0.000000e+00 : f32
      %50 = vector.broadcast %cst_21 : f32 to vector<1x128xf32>
      %c0_22 = arith.constant 0 : index
      %c0_23 = arith.constant 0 : index
      %51 = vector.load %arg3[%c0_22, %c0_23] : memref<1x128xf32, #tpu.memory_space<vmem>>, vector<1x128xf32>
      tpu.vector_store %arg3[%c0_22, %c0_23], %50 {strides = array<i32>} : memref<1x128xf32, #tpu.memory_space<vmem>>, vector<1x128xf32>,
    } else {
    }
    %c0 = arith.constant 0 : index
    %c0_1 = arith.constant 0 : index
    %3 = vector.load %arg2[%c0, %c0_1] : memref<16x128xf32, #tpu.memory_space<vmem>>, vector<16x128xf32>
    %c0_2 = arith.constant 0 : index
    %c0_3 = arith.constant 0 : index
    %4 = vector.load %arg1[%c0_2, %c0_3] : memref<16x128xf32, #tpu.memory_space<vmem>>, vector<16x128xf32>
    %5 = arith.subf %3, %4 : vector<16x128xf32>
    %6 = math.absf %5 : vector<16x128xf32>
    %cst = arith.constant 2.100000e+00 : f32
    %7 = vector.broadcast %cst : f32 to vector<16x128xf32>
    %8 = arith.subf %7, %3 : vector<16x128xf32>
    %cst_4 = arith.constant 0.0714285746 : f32
    %9 = vector.broadcast %cst_4 : f32 to vector<16x128xf32>
    %10 = arith.mulf %6, %9 : vector<16x128xf32>
    %cst_5 = arith.constant 9.99999991E-38 : f32
    %11 = vector.broadcast %cst_5 : f32 to vector<16x128xf32>
    %12 = arith.maximumf %10, %11 : vector<16x128xf32>
    %13 = math.log %12 : vector<16x128xf32>
    %14 = arith.mulf %8, %13 : vector<16x128xf32>
    %15 = math.exp %14 : vector<16x128xf32>
    %cst_6 = arith.constant 1.000000e+00 : f32
    %16 = vector.broadcast %cst_6 : f32 to vector<16x128xf32>
    %17 = arith.addf %16, %15 : vector<16x128xf32>
    %18 = math.log %17 : vector<16x128xf32>
    %cst_7 = arith.constant 1.400000e+01 : f32
    %19 = vector.broadcast %cst_7 : f32 to vector<16x128xf32>
    %20 = arith.mulf %19, %18 : vector<16x128xf32>
    %cst_8 = arith.constant -0.693147182 : f32
    %21 = vector.broadcast %cst_8 : f32 to vector<16x128xf32>
    %22 = arith.mulf %8, %21 : vector<16x128xf32>
    %23 = math.exp %22 : vector<16x128xf32>
    %cst_9 = arith.constant 2.000000e+00 : f32
    %24 = vector.broadcast %cst_9 : f32 to vector<16x128xf32>
    %25 = arith.mulf %23, %24 : vector<16x128xf32>
    %cst_10 = arith.constant 1.000000e+00 : f32
    %26 = vector.broadcast %cst_10 : f32 to vector<16x128xf32>
    %27 = arith.addf %26, %23 : vector<16x128xf32>
    %28 = math.log %27 : vector<16x128xf32>
    %cst_11 = arith.constant 1.400000e+01 : f32
    %29 = vector.broadcast %cst_11 : f32 to vector<16x128xf32>
    %30 = arith.mulf %29, %8 : vector<16x128xf32>
    %31 = arith.mulf %30, %25 : vector<16x128xf32>
    %cst_12 = arith.constant 1.000000e+00 : f32
    %32 = vector.broadcast %cst_12 : f32 to vector<16x128xf32>
    %33 = arith.addf %32, %23 : vector<16x128xf32>
    %34 = arith.divf %31, %33 : vector<16x128xf32>
    %cst_13 = arith.constant 5.000000e-01 : f32
    %35 = vector.broadcast %cst_13 : f32 to vector<16x128xf32>
    %36 = arith.mulf %35, %34 : vector<16x128xf32>
    %cst_14 = arith.constant 1.400000e+01 : f32
    %37 = vector.broadcast %cst_14 : f32 to vector<16x128xf32>
    %38 = arith.mulf %37, %28 : vector<16x128xf32>
    %39 = arith.subf %36, %38 : vector<16x128xf32>
    %40 = arith.mulf %34, %6 : vector<16x128xf32>
    %41 = arith.subf %40, %39 : vector<16x128xf32>
    %cst_15 = arith.constant 5.000000e-01 : f32
    %42 = vector.broadcast %cst_15 : f32 to vector<16x128xf32>
    %43 = arith.cmpf olt, %6, %42 : vector<16x128xf32>
    %44 = arith.select %43, %20, %41 : vector<16x128xi1>, vector<16x128xf32>
    %c0_16 = arith.constant 0 : index
    %c0_17 = arith.constant 0 : index
    %45 = vector.load %arg3[%c0_16, %c0_17] : memref<1x128xf32, #tpu.memory_space<vmem>>, vector<1x128xf32>
    %cst_18 = arith.constant dense<0.000000e+00> : vector<128xf32>
    %46 = vector.multi_reduction <add>, %44, %cst_18 [0] : vector<16x128xf32> to vector<128xf32>
    %47 = vector.shape_cast %46 : vector<128xf32> to vector<1x128xf32>
    %48 = arith.addf %45, %47 : vector<1x128xf32>
    %c0_19 = arith.constant 0 : index
    %c0_20 = arith.constant 0 : index
    %49 = vector.load %arg3[%c0_19, %c0_20] : memref<1x128xf32, #tpu.memory_space<vmem>>, vector<1x128xf32>
    tpu.vector_store %arg3[%c0_19, %c0_20], %48 {strides = array<i32>} : memref<1x128xf32, #tpu.memory_space<vmem>>, vector<1x128xf32>,
    return
  }
  func.func @transform_0(%arg0: i32) -> (i32, i32) {
    %c0_i32 = arith.constant 0 : i32
    %c0_i32_0 = arith.constant 0 : i32
    return %arg0, %c0_i32 : i32, i32
  }
  func.func @transform_1(%arg0: i32) -> (i32, i32) {
    %c0_i32 = arith.constant 0 : i32
    %c0_i32_0 = arith.constant 0 : i32
    return %arg0, %c0_i32 : i32, i32
  }
  func.func @transform_2(%arg0: i32) -> (i32, i32) {
    %c0_i32 = arith.constant 0 : i32
    %c0_i32_0 = arith.constant 0 : i32
    %c0_i32_1 = arith.constant 0 : i32
    return %c0_i32, %c0_i32_0 : i32, i32
  }
}

</mosaic_0001>

<llo_original>
// kernel: tpu_custom_call.1
$region0: #{tpu_custom_call.1}
  #allocation0 [shape = 'u32[]', space=smem, size = 0x4, offset = 0x4, fixed_abs, tag = 'smem constant byte address 0x4 - core index']
  #allocation1 [shape = 'u32[144,128]{1,0:T(1,128)}', space=vmem, size = 0x12000, scoped, tag = 'internal scratch']
  %s0 = inlined_call_operand.hbm [shape: f32[16,128], index: 0, kind: input, shape index: {}]
  %s1 = inlined_call_operand.hbm [shape: f32[16,128], index: 1, kind: input, shape index: {}]
  %s2 = inlined_call_operand.hbm [shape: f32[1,128], index: 2, kind: output, shape index: {}]
  %s3 = sld [smem:[#allocation0]]
  $region30: #{tpu_custom_call.1} parent=0
    _
  %s5 = ssub.s32 1, %s3
  %s6 = scalar_select 0, %s5, %s3
  $region1: #{tpu_custom_call.1} parent=0
    #allocation2 [shape = 'u8[8192]{0}', space=vmem, size = 0x2000, scoped, tag = 'input window, operand 0, single buffered']
    #allocation3 [shape = 's32[1]{0}', space=sflag, size = 0x4, scoped, tag = 'scoped memory for tpu_custom_call.1']
    #allocation4 [shape = 's32[1]{0}', space=sflag, size = 0x4, scoped, tag = 'scoped memory for tpu_custom_call.1']
    #allocation5 [shape = 'u8[8192]{0}', space=vmem, size = 0x2000, scoped, tag = 'input window, operand 1, single buffered']
    #allocation6 [shape = 's32[1]{0}', space=sflag, size = 0x4, scoped, tag = 'scoped memory for tpu_custom_call.1']
    #allocation7 [shape = 'u8[512]{0}', space=vmem, size = 0x400, scoped, tag = 'output window, operand 0, single buffered']
    %7 = vsyncpa [#allocation3], 0
    %8 = vsyncpa [#allocation6], 0
    %9 = vsyncpa [#allocation4], 0
    // Predicated region
    $region2: #{tpu_custom_call.1} parent=1 // pred_check
      _
    $region3: #{tpu_custom_call.1} parent=1 // pred_check_branch
      %11 = sbr.rel (0) target = $region5
    $region4: #{tpu_custom_call.1} parent=1 // pred_region
      %s13 = ssub.s32 256, 256
      %14 = vsyncadd [#allocation3], %s13
      %s15 = sshll.u32 [#allocation2], 4
      %s16 = int_to_ptr.vmem [resolvable:$true] %s15
      %21 = dma.hbm_to_vmem [thread:$0]  %s0, 256, %s16, [#allocation3], 128, 128, 8
    $region5: #{tpu_custom_call.1} parent=1 // pred_fallthru
      _
    // Predicated region
    $region6: #{tpu_custom_call.1} parent=1 // pred_check
      _
    $region7: #{tpu_custom_call.1} parent=1 // pred_check_branch
      %23 = sbr.rel (0) target = $region9
    $region8: #{tpu_custom_call.1} parent=1 // pred_region
      %s25 = ssub.s32 256, 256
      %26 = vsyncadd [#allocation6], %s25
      %s27 = sshll.u32 [#allocation5], 4
      %s28 = int_to_ptr.vmem [resolvable:$true] %s27
      %33 = dma.hbm_to_vmem [thread:$0]  %s1, 256, %s28, [#allocation6], 128, 128, 8
    $region9: #{tpu_custom_call.1} parent=1 // pred_fallthru
      _
    // Predicated region
    $region10: #{tpu_custom_call.1} parent=1 // pred_check
      _
    $region11: #{tpu_custom_call.1} parent=1 // pred_check_branch
      %35 = sbr.rel (0) target = $region13
    $region12: #{tpu_custom_call.1} parent=1 // pred_region
      %36 = dma.done [#allocation3], 256
    $region13: #{tpu_custom_call.1} parent=1 // pred_fallthru
      _
    // Predicated region
    $region14: #{tpu_custom_call.1} parent=1 // pred_check
      _
    $region15: #{tpu_custom_call.1} parent=1 // pred_check_branch
      %38 = sbr.rel (0) target = $region17
    $region16: #{tpu_custom_call.1} parent=1 // pred_region
      %39 = dma.done [#allocation6], 256
    $region17: #{tpu_custom_call.1} parent=1 // pred_fallthru
      _
    %p40 = scmp.eq.s32.totalorder 0, 0
    // Predicated region
    $region18: #{tpu_custom_call.1} parent=1 // pred_check
      %p41 = pneg %p40
    $region19: #{tpu_custom_call.1} parent=1 // pred_check_branch
      %43 = sbr.rel (%p41) target = $region21
    $region20: #{tpu_custom_call.1} parent=1 // pred_region
      %44 = vst [vmem:[#allocation7] sm:$0x1] 0.0
    $region21: #{tpu_custom_call.1} parent=1 // pred_fallthru
      _
    %v45 = vld [vmem:[#allocation5] sm:$0xff]
    %v46 = vld [vmem:[#allocation5 + $0x8] sm:$0xff]
    %v47 = vld [vmem:[#allocation2] sm:$0xff]
    %v48 = vld [vmem:[#allocation2 + $0x8] sm:$0xff]
    %v49 = vsub.f32 %v45, %v47
    %v50 = vsub.f32 %v46, %v48
    %v51 = vand.u32 2147483647, %v49
    %v52 = vand.u32 2147483647, %v50
    %v53 = vsub.f32 2.1, %v45
    %v54 = vsub.f32 2.1, %v46
    %v55 = vmul.f32 %v51, 0.071428575
    %v56 = vmul.f32 %v52, 0.071428575
    %v57 = vmax.f32 %v55, 1e-37
    %v58 = vmax.f32 %v56, 1e-37
    %v59 = vlog2.pop %v57
    %v60 = vmul.f32 %v59, 0.6931472
    %v61 = vlog2.pop %v58
    %v62 = vmul.f32 %v61, 0.6931472
    %v63 = vmul.f32 %v53, %v60
    %v64 = vmul.f32 %v54, %v62
    %v65 = vmul.f32 %v63, 1.442695
    %v66 = vpow.pop %v65
    %v67 = vmul.f32 %v64, 1.442695
    %v68 = vpow.pop %v67
    %v69 = vadd.f32 %v66, 1.0
    %v70 = vadd.f32 %v68, 1.0
    %v71 = vlog2.pop %v69
    %v72 = vmul.f32 %v71, 0.6931472
    %v73 = vlog2.pop %v70
    %v74 = vmul.f32 %v73, 0.6931472
    %v75 = vmul.f32 %v72, 14.0
    %v76 = vmul.f32 %v74, 14.0
    %v77 = vmul.f32 %v53, -0.6931472
    %v78 = vmul.f32 %v54, -0.6931472
    %v79 = vmul.f32 %v77, 1.442695
    %v80 = vpow.pop %v79
    %v81 = vmul.f32 %v78, 1.442695
    %v82 = vpow.pop %v81
    %v83 = vmul.f32 %v80, 2.0
    %v84 = vmul.f32 %v82, 2.0
    %v85 = vadd.f32 %v80, 1.0
    %v86 = vadd.f32 %v82, 1.0
    %v87 = vlog2.pop %v85
    %v88 = vmul.f32 %v87, 0.6931472
    %v89 = vlog2.pop %v86
    %v90 = vmul.f32 %v89, 0.6931472
    %v91 = vmul.f32 %v53, 14.0
    %v92 = vmul.f32 %v54, 14.0
    %v93 = vmul.f32 %v91, %v83
    %v94 = vmul.f32 %v92, %v84
    %v95 = vrcp.pop %v85
    %v96 = vmul.f32 %v93, %v95
    %v97 = vrcp.pop %v86
    %v98 = vmul.f32 %v94, %v97
    %v99 = vmul.f32 %v96, 0.5
    %v100 = vmul.f32 %v98, 0.5
    %v101 = vmul.f32 %v88, 14.0
    %v102 = vmul.f32 %v90, 14.0
    %v103 = vsub.f32 %v99, %v101
    %v104 = vsub.f32 %v100, %v102
    %v105 = vmul.f32 %v96, %v51
    %v106 = vmul.f32 %v98, %v52
    %v107 = vsub.f32 %v105, %v103
    %v108 = vsub.f32 %v106, %v104
    %vm109 = vcmp.lt.f32.partialorder %v51, 0.5
    %vm110 = vcmp.lt.f32.partialorder %v52, 0.5
    %v111 = vsel %vm109, %v75, %v107
    %v112 = vsel %vm110, %v76, %v108
    %v113 = vld [vmem:[#allocation7] sm:$0x1]
    %v114 = vadd.f32 %v111, %v112
    %v115 = vrot.slane %v114, 4
    %v116 = vadd.f32 %v114, %v115
    %v117 = vrot.slane %v116, 2
    %v118 = vadd.f32 %v116, %v117
    %v119 = vrot.slane %v118, 1
    %v120 = vadd.f32 %v118, %v119
    %v121 = vadd.f32 %v113, %v120
    %122 = vst [vmem:[#allocation7] sm:$0x1] %v121
    // Predicated region
    $region22: #{tpu_custom_call.1} parent=1 // pred_check
      _
    $region23: #{tpu_custom_call.1} parent=1 // pred_check_branch
      %124 = sbr.rel (0) target = $region25
    $region24: #{tpu_custom_call.1} parent=1 // pred_region
      %s126 = ssub.s32 16, 16
      %127 = vsyncadd [#allocation4], %s126
      %s129 = sshll.u32 [#allocation7], 4
      %s130 = int_to_ptr.vmem [resolvable:$true] %s129
      %132 = dma.vmem_to_hbm [thread:$0]  %s130, 16, %s2, [#allocation4]
    $region25: #{tpu_custom_call.1} parent=1 // pred_fallthru
      _
    // Predicated region
    $region26: #{tpu_custom_call.1} parent=1 // pred_check
      _
    $region27: #{tpu_custom_call.1} parent=1 // pred_check_branch
      %134 = sbr.rel (0) target = $region29
    $region28: #{tpu_custom_call.1} parent=1 // pred_region
      %135 = dma.done [#allocation4], 16
    $region29: #{tpu_custom_call.1} parent=1 // pred_fallthru
      _
    %136 = vsyncpa [#allocation3], 1
    %137 = vsyncpa [#allocation6], 1
    %138 = vsyncpa [#allocation4], 1

</llo_original>
